<compile_context>
chip_gen: v7x
topology: tpu7x:2x2x1
jax: 0.10.0
libtpu: 0.0.40
codegen_flags: <defaults>
</compile_context>

<pallas_src>
import jax
import jax.numpy as jnp
from jax.experimental import pallas as pl
from jax.experimental.pallas import tpu as pltpu


def _round_up(x: int, m: int) -> int:
    return (x + m - 1) // m * m


def _cdiv(a: int, b: int) -> int:
    return -(-a // b)


def _vmem_limits():
    """Generation-aware VMEM limits (v5e/v6e: 128 MiB physical, v7x: 64 MiB)."""
    try:
        cap = int(pltpu.get_tpu_info().vmem_capacity_bytes)
    except Exception:
        cap = 64 * 1024 * 1024  # conservative fallback: v7x physical VMEM
    limit = min(cap * 3 // 4, 96 * 1024 * 1024)   # scoped VMEM limit for the kernel
    budget = max(limit - 4 * 1024 * 1024, limit // 2)  # headroom for Mosaic internals
    return limit, budget


def _make_deepfm_kernel(feature_sizes):
    """Kernel closed over the static (padded, sublane-aligned) feature widths."""
    offsets = []
    off = 0
    for f in feature_sizes:
        offsets.append(off)
        off += f
    n_emb = len(feature_sizes)

    def kernel(*refs):
        e_refs = refs[:n_emb]            # each: (TB, F_i) VMEM tile
        w_ref = refs[n_emb]              # (F, D_out) VMEM (resident)
        b_ref = refs[n_emb + 1]          # (1, D_out) f32 VMEM (resident)
        o_ref = refs[n_emb + 2]          # (TB, D_out) f32 VMEM tile

        # Bias folded into the accumulator init; accumulate in f32 directly in
        # the output VMEM tile (no large live vreg accumulator).
        o_ref[...] = jnp.broadcast_to(b_ref[...], o_ref.shape)
        for e_ref, off_i, f_i in zip(e_refs, offsets, feature_sizes):
            # off_i / f_i are sublane-aligned (padded in the wrapper), so this
            # weight slice is view-like (no per-step VMEM copy).
            o_ref[...] += jnp.dot(e_ref[...], w_ref[off_i:off_i + f_i, :],
                                  preferred_element_type=jnp.float32)
        # TODO(synk): for dozens of tiny embeddings (K=8..64), pack tiles into a
        # single (TB, F) scratch and do one K=F dot to avoid per-dot MXU
        # fill/drain; not worth it at the embedding counts exercised here.

    return kernel


def deepfm_forward(embeddings, weight, bias, *,
                   block_b: int = 4096,
                   compute_dtype=jnp.bfloat16,
                   min_pallas_batch: int = 0):
    """DeepFM forward: dense_module(concat([e.flatten(1) for e in embeddings])).

    Args:
      embeddings: list of (B, num_emb_i, emb_dim_i) float arrays.
      weight:     (F, D_out), F = sum_i num_emb_i * emb_dim_i  (pre-transposed
                  nn.Linear weight, i.e. W.T of the PyTorch [out, in] layout).
      bias:       (D_out,).
      block_b:    max batch-tile rows (auto-capped by the VMEM budget).
      compute_dtype: dtype for the x/W streams (default bf16: memory-bound
                  kernel, halves HBM traffic); accumulation is always f32.
                  Pass jnp.float32 (or None) for exact f32 compute.
      min_pallas_batch: below this batch size, fall back to plain XLA.
    Returns:
      (B, D_out) float32.
    """
    B = embeddings[0].shape[0]
    # flatten(1): row-major reshape, no HBM copy — the concat itself is fused
    # into the kernel instead of being materialized.
    flats = [e.reshape(B, -1) for e in embeddings]
    feature_sizes = [int(f.shape[1]) for f in flats]
    F = sum(feature_sizes)
    F_w, D_out = weight.shape
    assert F_w == F, (F_w, F)

    bias_f32 = bias.astype(jnp.float32)

    if B < min_pallas_batch:
        x = jnp.concatenate(flats, axis=1)
        return jnp.dot(x, weight, preferred_element_type=jnp.float32) + bias_f32

    in_dtype = flats[0].dtype
    if compute_dtype is not None and compute_dtype != in_dtype:
        flats = [f.astype(compute_dtype) for f in flats]
        weight = weight.astype(compute_dtype)
    itemsize = jnp.dtype(flats[0].dtype).itemsize
    w_itemsize = jnp.dtype(weight.dtype).itemsize

    # --- pad each per-embedding width to the sublane pack so the in-kernel
    #     weight-row slices are tile-aligned (zero rows/cols keep exactness).
    pack = 8 * (4 // itemsize)             # 8 for f32, 16 for bf16
    padded_sizes = [_round_up(fs, pack) for fs in feature_sizes]
    if padded_sizes != feature_sizes:
        new_flats, w_parts, off = [], [], 0
        for f, fs, ps in zip(flats, feature_sizes, padded_sizes):
            new_flats.append(jnp.pad(f, ((0, 0), (0, ps - fs))) if ps != fs else f)
            w_parts.append(weight[off:off + fs])
            if ps != fs:
                w_parts.append(jnp.zeros((ps - fs, D_out), weight.dtype))
            off += fs
        flats = new_flats
        weight = jnp.concatenate(w_parts, axis=0)
        feature_sizes = padded_sizes
        F = sum(feature_sizes)

    vmem_limit, vmem_budget = _vmem_limits()

    # --- VMEM accounting.  Pallas double-buffers every BlockSpec input/output,
    #     even ones with a constant index_map, so resident W/b count 2x.
    resident_bytes = 2 * (F * D_out * w_itemsize + D_out * 4)
    per_row_bytes = 2 * (F * itemsize + D_out * 4)     # x tiles + out tiles, 2x buffered
    avail = vmem_budget - resident_bytes
    if avail < 8 * per_row_bytes:
        # Resident weight leaves no room for even a minimal batch tile.
        # TODO(synk): K-tiled weight path (reduction grid axis + f32 VMEM
        # accumulator with pl.when init/epilogue) for very large dense layers.
        x = jnp.concatenate(flats, axis=1)
        return jnp.dot(x, weight, preferred_element_type=jnp.float32) + bias_f32

    # --- choose the batch tile: as large as the VMEM budget / block_b allow,
    #     with enough grid steps on large batches for pipeline fill and both
    #     v7x TensorCores, and TB roughly dividing B to limit padding waste.
    tb_vmem = max(pack, (avail // per_row_bytes) // pack * pack)
    tb_cap = max(pack, min(block_b, tb_vmem) // pack * pack)
    n_steps = max(_cdiv(B, tb_cap), min(8, _cdiv(B, 1024)), 1)
    TB = min(tb_cap, _round_up(_cdiv(B, n_steps), pack))
    TB = max(TB, pack)

    n_tiles = _cdiv(B, TB)
    Bp = n_tiles * TB
    if Bp != B:
        # Only the ragged remainder is padded; zero rows produce `bias` rows
        # that are sliced off below.
        flats = [jnp.pad(f, ((0, Bp - B), (0, 0))) for f in flats]

    b2d = bias_f32.reshape(1, D_out)

    kernel = _make_deepfm_kernel(feature_sizes)

    in_specs = [pl.BlockSpec((TB, fi), lambda i: (i, 0)) for fi in feature_sizes]
    in_specs.append(pl.BlockSpec((F, D_out), lambda i: (0, 0)))    # weight: resident
    in_specs.append(pl.BlockSpec((1, D_out), lambda i: (0, 0)))    # bias:   resident

    cost = pl.CostEstimate(
        flops=2 * Bp * F * D_out,
        transcendentals=0,
        bytes_accessed=Bp * F * itemsize + F * D_out * w_itemsize
        + Bp * D_out * 4 + D_out * 4,
    )

    # TODO(synk): if downstream tolerates it, pad D_out to a multiple of 128 (or
    # emit bf16 output) for lane-dense stores; at D_out=30 the extra writeback
    # bytes outweigh the masked-store win, so we keep the exact width.
    out = pl.pallas_call(
        kernel,
        out_shape=jax.ShapeDtypeStruct((Bp, D_out), jnp.float32),
        grid_spec=pltpu.PrefetchScalarGridSpec(
            num_scalar_prefetch=0,
            grid=(n_tiles,),
            in_specs=in_specs,
            out_specs=pl.BlockSpec((TB, D_out), lambda i: (i, 0)),
        ),
        compiler_params=pltpu.CompilerParams(
            dimension_semantics=("parallel",),        # shard batch across TCs (v7x)
            vmem_limit_bytes=vmem_limit,              # generation-aware limit
        ),
        cost_estimate=cost,
    )(*flats, weight, b2d)

    return out[:B] if Bp != B else out


if __name__ == "__main__":
    key = jax.random.PRNGKey(0)
    k1, k2, k3, k4 = jax.random.split(key, 4)

    # Matches the module docstring example: batch=3, embeddings (3,2,64) and
    # (3,2,32), dense_module = nn.Linear(192, 30).
    batch_size = 3
    out_dim = 30
    emb_a = jax.random.normal(k1, (batch_size, 2, 64), dtype=jnp.float32)
    emb_b = jax.random.normal(k2, (batch_size, 2, 32), dtype=jnp.float32)
    embeddings = [emb_a, emb_b]

    in_features = 2 * 64 + 2 * 32  # 192
    bound = 1.0 / (in_features ** 0.5)
    weight = jax.random.uniform(
        k3, (in_features, out_dim), minval=-bound, maxval=bound, dtype=jnp.float32
    )
    bias = jax.random.uniform(
        k4, (out_dim,), minval=-bound, maxval=bound, dtype=jnp.float32
    )

    # --- test 1: docstring shapes, exact f32 path (single 8-row tile) ---
    out = deepfm_forward(embeddings, weight, bias, compute_dtype=jnp.float32)
    out = jax.block_until_ready(out)
    x_ref = jnp.concatenate([e.reshape(batch_size, -1) for e in embeddings], axis=1)
    ref = x_ref @ weight + bias
    assert out.shape == (batch_size, out_dim)
    assert jnp.allclose(out, ref, atol=1e-5, rtol=1e-5)

    # --- test 2: multi-step batch tiling (4 pipelined grid steps), f32 ---
    B2 = 64
    e1 = jax.random.normal(jax.random.PRNGKey(1), (B2, 2, 64), dtype=jnp.float32)
    e2 = jax.random.normal(jax.random.PRNGKey(2), (B2, 2, 32), dtype=jnp.float32)
    out2 = deepfm_forward([e1, e2], weight, bias, block_b=16,
                          compute_dtype=jnp.float32)
    out2 = jax.block_until_ready(out2)
    x2 = jnp.concatenate([e1.reshape(B2, -1), e2.reshape(B2, -1)], axis=1)
    ref2 = x2 @ weight + bias
    assert out2.shape == (B2, out_dim)
    assert jnp.allclose(out2, ref2, atol=1e-5, rtol=1e-5)

    # --- test 3: default bf16 streaming path (f32 accumulation) ---
    B3 = 256
    e3a = jax.random.normal(jax.random.PRNGKey(3), (B3, 2, 64), dtype=jnp.float32)
    e3b = jax.random.normal(jax.random.PRNGKey(4), (B3, 2, 32), dtype=jnp.float32)
    out3 = deepfm_forward([e3a, e3b], weight, bias)  # default compute_dtype=bf16
    out3 = jax.block_until_ready(out3)
    x3 = jnp.concatenate([e3a.reshape(B3, -1), e3b.reshape(B3, -1)],
                         axis=1).astype(jnp.bfloat16)
    ref3 = jnp.dot(x3, weight.astype(jnp.bfloat16),
                   preferred_element_type=jnp.float32) + bias
    assert out3.shape == (B3, out_dim)
    assert jnp.allclose(out3, ref3, atol=5e-3, rtol=5e-3)

    print("KERNEL_OK")
</pallas_src>

<mosaic_0001>
module attributes {stable_mosaic.version = 11 : i64} {
  func.func @kernel(%arg0: i32, %arg1: memref<8x128xf32, #tpu.memory_space<vmem>>, %arg2: memref<8x64xf32, #tpu.memory_space<vmem>>, %arg3: memref<192x30xf32, #tpu.memory_space<vmem>>, %arg4: memref<1x30xf32, #tpu.memory_space<vmem>>, %arg5: memref<8x30xf32, #tpu.memory_space<vmem>>) attributes {dimension_semantics = [#tpu.dimension_semantics<parallel>], iteration_bounds = array<i64: 1>, scalar_prefetch = 0 : i64, scratch_operands = 0 : i64, tpu.core_type = #tpu.core_type<tc>, window_params = [{transform_indices = @transform_0, window_bounds = array<i64: 8, 128>}, {transform_indices = @transform_1, window_bounds = array<i64: 8, 64>}, {pipeline_mode = #tpu.pipeline_mode<synchronous>, transform_indices = @transform_2, window_bounds = array<i64: 192, 30>}, {pipeline_mode = #tpu.pipeline_mode<synchronous>, transform_indices = @transform_3, window_bounds = array<i64: 1, 30>}, {transform_indices = @transform_4, window_bounds = array<i64: 8, 30>}]} {
    %c0 = arith.constant 0 : index
    %c0_0 = arith.constant 0 : index
    %0 = vector.load %arg4[%c0, %c0_0] : memref<1x30xf32, #tpu.memory_space<vmem>>, vector<1x30xf32>
    %1 = vector.shape_cast %0 : vector<1x30xf32> to vector<1x30xf32>
    %2 = vector.broadcast %1 : vector<1x30xf32> to vector<8x30xf32>
    %c0_1 = arith.constant 0 : index
    %c0_2 = arith.constant 0 : index
    %3 = vector.load %arg5[%c0_1, %c0_2] : memref<8x30xf32, #tpu.memory_space<vmem>>, vector<8x30xf32>
    tpu.vector_store %arg5[%c0_1, %c0_2], %2 {strides = array<i32>} : memref<8x30xf32, #tpu.memory_space<vmem>>, vector<8x30xf32>,
    %c0_3 = arith.constant 0 : index
    %c0_4 = arith.constant 0 : index
    %4 = vector.load %arg5[%c0_3, %c0_4] : memref<8x30xf32, #tpu.memory_space<vmem>>, vector<8x30xf32>
    %c0_5 = arith.constant 0 : index
    %c0_6 = arith.constant 0 : index
    %5 = vector.load %arg1[%c0_5, %c0_6] : memref<8x128xf32, #tpu.memory_space<vmem>>, vector<8x128xf32>
    %c0_7 = arith.constant 0 : index
    %c0_8 = arith.constant 0 : index
    %6 = vector.load %arg3[%c0_7, %c0_8] : memref<192x30xf32, #tpu.memory_space<vmem>>, vector<128x30xf32>
    %cst = arith.constant dense<0.000000e+00> : vector<8x30xf32>
    %7 = tpu.matmul %5, %6, %cst {dimension_numbers = #tpu.dot_dimension_numbers<[1], [0], [0], [1], [0, 0, 1, 1], [], []>} : vector<8x128xf32>, vector<128x30xf32>, vector<8x30xf32> -> vector<8x30xf32>
    %8 = arith.addf %4, %7 : vector<8x30xf32>
    %c0_9 = arith.constant 0 : index
    %c0_10 = arith.constant 0 : index
    %9 = vector.load %arg5[%c0_9, %c0_10] : memref<8x30xf32, #tpu.memory_space<vmem>>, vector<8x30xf32>
    tpu.vector_store %arg5[%c0_9, %c0_10], %8 {strides = array<i32>} : memref<8x30xf32, #tpu.memory_space<vmem>>, vector<8x30xf32>,
    %c0_11 = arith.constant 0 : index
    %c0_12 = arith.constant 0 : index
    %10 = vector.load %arg5[%c0_11, %c0_12] : memref<8x30xf32, #tpu.memory_space<vmem>>, vector<8x30xf32>
    %c0_13 = arith.constant 0 : index
    %c0_14 = arith.constant 0 : index
    %11 = vector.load %arg2[%c0_13, %c0_14] : memref<8x64xf32, #tpu.memory_space<vmem>>, vector<8x64xf32>
    %c128 = arith.constant 128 : index
    %c0_15 = arith.constant 0 : index
    %12 = vector.load %arg3[%c128, %c0_15] : memref<192x30xf32, #tpu.memory_space<vmem>>, vector<64x30xf32>
    %cst_16 = arith.constant dense<0.000000e+00> : vector<8x30xf32>
    %13 = tpu.matmul %11, %12, %cst_16 {dimension_numbers = #tpu.dot_dimension_numbers<[1], [0], [0], [1], [0, 0, 1, 1], [], []>} : vector<8x64xf32>, vector<64x30xf32>, vector<8x30xf32> -> vector<8x30xf32>
    %14 = arith.addf %10, %13 : vector<8x30xf32>
    %c0_17 = arith.constant 0 : index
    %c0_18 = arith.constant 0 : index
    %15 = vector.load %arg5[%c0_17, %c0_18] : memref<8x30xf32, #tpu.memory_space<vmem>>, vector<8x30xf32>
    tpu.vector_store %arg5[%c0_17, %c0_18], %14 {strides = array<i32>} : memref<8x30xf32, #tpu.memory_space<vmem>>, vector<8x30xf32>,
    return
  }
  func.func @transform_0(%arg0: i32) -> (i32, i32) {
    %c0_i32 = arith.constant 0 : i32
    %c0_i32_0 = arith.constant 0 : i32
    return %arg0, %c0_i32 : i32, i32
  }
  func.func @transform_1(%arg0: i32) -> (i32, i32) {
    %c0_i32 = arith.constant 0 : i32
    %c0_i32_0 = arith.constant 0 : i32
    return %arg0, %c0_i32 : i32, i32
  }
  func.func @transform_2(%arg0: i32) -> (i32, i32) {
    %c0_i32 = arith.constant 0 : i32
    %c0_i32_0 = arith.constant 0 : i32
    %c0_i32_1 = arith.constant 0 : i32
    return %c0_i32, %c0_i32_0 : i32, i32
  }
  func.func @transform_3(%arg0: i32) -> (i32, i32) {
    %c0_i32 = arith.constant 0 : i32
    %c0_i32_0 = arith.constant 0 : i32
    %c0_i32_1 = arith.constant 0 : i32
    return %c0_i32, %c0_i32_0 : i32, i32
  }
  func.func @transform_4(%arg0: i32) -> (i32, i32) {
    %c0_i32 = arith.constant 0 : i32
    %c0_i32_0 = arith.constant 0 : i32
    return %arg0, %c0_i32 : i32, i32
  }
}

</mosaic_0001>

<llo_original>
// kernel: tpu_custom_call.1
$region0: #{tpu_custom_call.1}
  #allocation0 [shape = 'u32[]', space=smem, size = 0x4, offset = 0x4, fixed_abs, tag = 'smem constant byte address 0x4 - core index']
  #allocation1 [shape = 'u32[144,128]{1,0:T(1,128)}', space=vmem, size = 0x12000, scoped, tag = 'internal scratch']
  %s0 = inlined_call_operand.vmem [shape: f32[8,128], index: 0, kind: input, shape index: {}]
  %s1 = inlined_call_operand.vmem [shape: f32[8,64], index: 1, kind: input, shape index: {}]
  %s2 = inlined_call_operand.vmem [shape: f32[192,30], index: 2, kind: input, shape index: {}]
  %s3 = inlined_call_operand.vmem [shape: f32[1,30], index: 3, kind: input, shape index: {}]
  %s4 = inlined_call_operand.hbm [shape: f32[8,30], index: 4, kind: output, shape index: {}]
  %s5 = sld [smem:[#allocation0]]
  $region26: #{tpu_custom_call.1} parent=0
    _
  %s7 = ssub.s32 1, %s5
  %s8 = scalar_select 0, %s7, %s5
  $region1: #{tpu_custom_call.1} parent=0
    #allocation2 [shape = 'u8[4096]{0}', space=vmem, size = 0x1000, scoped, tag = 'output window, operand 0, single buffered']
    #allocation3 [shape = 's32[1]{0}', space=sflag, size = 0x4, scoped, tag = 'scoped memory for tpu_custom_call.1']
    %9 = vsyncpa [#allocation3], 0
    // Predicated region
    $region2: #{tpu_custom_call.1} parent=1 // pred_check
      _
    $region3: #{tpu_custom_call.1} parent=1 // pred_check_branch
      %11 = sbr.rel (0) target = $region5
    $region4: #{tpu_custom_call.1} parent=1 // pred_region
      _
    $region5: #{tpu_custom_call.1} parent=1 // pred_fallthru
      _
    // Predicated region
    $region6: #{tpu_custom_call.1} parent=1 // pred_check
      _
    $region7: #{tpu_custom_call.1} parent=1 // pred_check_branch
      %13 = sbr.rel (0) target = $region9
    $region8: #{tpu_custom_call.1} parent=1 // pred_region
      _
    $region9: #{tpu_custom_call.1} parent=1 // pred_fallthru
      _
    // Predicated region
    $region10: #{tpu_custom_call.1} parent=1 // pred_check
      _
    $region11: #{tpu_custom_call.1} parent=1 // pred_check_branch
      %15 = sbr.rel (0) target = $region13
    $region12: #{tpu_custom_call.1} parent=1 // pred_region
      _
    $region13: #{tpu_custom_call.1} parent=1 // pred_fallthru
      _
    // Predicated region
    $region14: #{tpu_custom_call.1} parent=1 // pred_check
      _
    $region15: #{tpu_custom_call.1} parent=1 // pred_check_branch
      %17 = sbr.rel (0) target = $region17
    $region16: #{tpu_custom_call.1} parent=1 // pred_region
      _
    $region17: #{tpu_custom_call.1} parent=1 // pred_fallthru
      _
    %v18 = vld [vmem:[%s3] sm:$0x1]
    %v20 = vlaneseq
    %v21 = vshrl.u32 %v20, 7
    %v22 = vsub.s32 0, %v21
    %v23 = vrot.slane %v18, %v22
    %vm25 = vcmask 244736
    %26 = vst.msk [vmem:[#allocation2] sm:$0xff] %vm25, %v23
    %v27 = vld [vmem:[#allocation2] sm:$0xff]
    %v28 = vld [vmem:[%s0] sm:$0xff]
    %v29 = vld [vmem:[%s2] sm:$0xff]
    %v30 = vld [vmem:[%s2 + $0x8] sm:$0xff]
    %v31 = vld [vmem:[%s2 + $0x10] sm:$0xff]
    %v32 = vld [vmem:[%s2 + $0x18] sm:$0xff]
    %v33 = vld [vmem:[%s2 + $0x20] sm:$0xff]
    %v34 = vld [vmem:[%s2 + $0x28] sm:$0xff]
    %v35 = vld [vmem:[%s2 + $0x30] sm:$0xff]
    %v36 = vld [vmem:[%s2 + $0x38] sm:$0xff]
    %v37 = vld [vmem:[%s2 + $0x40] sm:$0xff]
    %v38 = vld [vmem:[%s2 + $0x48] sm:$0xff]
    %v39 = vld [vmem:[%s2 + $0x50] sm:$0xff]
    %v40 = vld [vmem:[%s2 + $0x58] sm:$0xff]
    %v41 = vld [vmem:[%s2 + $0x60] sm:$0xff]
    %v42 = vld [vmem:[%s2 + $0x68] sm:$0xff]
    %v43 = vld [vmem:[%s2 + $0x70] sm:$0xff]
    %v44 = vld [vmem:[%s2 + $0x78] sm:$0xff]
    %45 = vmatprep.subr.mxu0 0.0
    %46 = vmatpush1.msra.mxu0 %v29
    %47 = vmatprep.subr.mxu0 0.0
    %48 = vmatpush1.msra.mxu0 %v30
    %49 = vmatprep.subr.mxu0 0.0
    %50 = vmatpush1.msra.mxu0 %v31
    %51 = vmatprep.subr.mxu0 0.0
    %52 = vmatpush1.msra.mxu0 %v32
    %53 = vmatprep.subr.mxu0 0.0
    %54 = vmatpush1.msra.mxu0 %v33
    %55 = vmatprep.subr.mxu0 0.0
    %56 = vmatpush1.msra.mxu0 %v34
    %57 = vmatprep.subr.mxu0 0.0
    %58 = vmatpush1.msra.mxu0 %v35
    %59 = vmatprep.subr.mxu0 0.0
    %60 = vmatpush1.msra.mxu0 %v36
    %61 = vmatprep.subr.mxu0 0.0
    %62 = vmatpush1.msra.mxu0 %v37
    %63 = vmatprep.subr.mxu0 0.0
    %64 = vmatpush1.msra.mxu0 %v38
    %65 = vmatprep.subr.mxu0 0.0
    %66 = vmatpush1.msra.mxu0 %v39
    %67 = vmatprep.subr.mxu0 0.0
    %68 = vmatpush1.msra.mxu0 %v40
    %69 = vmatprep.subr.mxu0 0.0
    %70 = vmatpush1.msra.mxu0 %v41
    %71 = vmatprep.subr.mxu0 0.0
    %72 = vmatpush1.msra.mxu0 %v42
    %73 = vmatprep.subr.mxu0 0.0
    %74 = vmatpush1.msra.mxu0 %v43
    %75 = vmatprep.subr.mxu0 0.0
    %76 = vmatpush1.msra.mxu0 %v44
    %77 = vmatprep.subr.mxu0 0.0
    %78 = vmatpush1.msra.mxu0 0.0
    %79 = vmatprep.subr.mxu0 0.0
    %80 = vmatpush1.msra.mxu0 0.0
    %81 = vmatprep.subr.mxu0 0.0
    %82 = vmatpush1.msra.mxu0 0.0
    %83 = vmatprep.subr.mxu0 0.0
    %84 = vmatpush1.msra.mxu0 0.0
    %85 = vmatprep.subr.mxu0 0.0
    %86 = vmatpush1.msra.mxu0 0.0
    %87 = vmatprep.subr.mxu0 0.0
    %88 = vmatpush1.msra.mxu0 0.0
    %89 = vmatprep.subr.mxu0 0.0
    %90 = vmatpush1.msra.mxu0 0.0
    %91 = vmatprep.subr.mxu0 0.0
    %92 = vmatpush1.msra.mxu0 0.0
    %93 = vmatprep.subr.mxu0 0.0
    %94 = vmatpush1.msra.mxu0 0.0
    %95 = vmatprep.subr.mxu0 0.0
    %96 = vmatpush1.msra.mxu0 0.0
    %97 = vmatprep.subr.mxu0 0.0
    %98 = vmatpush1.msra.mxu0 0.0
    %99 = vmatprep.subr.mxu0 0.0
    %100 = vmatpush1.msra.mxu0 0.0
    %101 = vmatprep.subr.mxu0 0.0
    %102 = vmatpush1.msra.mxu0 0.0
    %103 = vmatprep.subr.mxu0 0.0
    %104 = vmatpush1.msra.mxu0 0.0
    %105 = vmatprep.subr.mxu0 0.0
    %106 = vmatpush1.msra.mxu0 0.0
    %107 = vmatprep.subr.mxu0 0.0
    %108 = vmatpush1.msra.mxu0 0.0
    %109 = vmatprep.mubr.f32.mxu0 0.0
    %110 = vmatmul.mubr.f32.gmra.mrb[0].mxu0 %v28
    %v111 = vpop.f32.mrb[0].mxu0
    %v112 = vadd.f32 0.0, %v111
    %v113 = vpop.f32.mrb[0].mxu0
    %114 = vdwg.mxu0
    %v115 = vadd.f32 %v27, %v112
    %116 = vst.msk [vmem:[#allocation2] sm:$0xff] %vm25, %v115
    %v117 = vld [vmem:[#allocation2] sm:$0xff]
    %v118 = vld [vmem:[%s1] sm:$0xff]
    %v119 = vld [vmem:[%s2 + $0x80] sm:$0xff]
    %v120 = vld [vmem:[%s2 + $0x88] sm:$0xff]
    %v121 = vld [vmem:[%s2 + $0x90] sm:$0xff]
    %v122 = vld [vmem:[%s2 + $0x98] sm:$0xff]
    %v123 = vld [vmem:[%s2 + $0xa0] sm:$0xff]
    %v124 = vld [vmem:[%s2 + $0xa8] sm:$0xff]
    %v125 = vld [vmem:[%s2 + $0xb0] sm:$0xff]
    %v126 = vld [vmem:[%s2 + $0xb8] sm:$0xff]
    %vm127 = vcmask 523264
    %v129 = vsel %vm127, %v118, 0
    %131 = vmatprep.subr.mxu0 0.0
    %132 = vmatpush1.msra.mxu0 %v119
    %133 = vmatprep.subr.mxu0 0.0
    %134 = vmatpush1.msra.mxu0 %v120
    %135 = vmatprep.subr.mxu0 0.0
    %136 = vmatpush1.msra.mxu0 %v121
    %137 = vmatprep.subr.mxu0 0.0
    %138 = vmatpush1.msra.mxu0 %v122
    %139 = vmatprep.subr.mxu0 0.0
    %140 = vmatpush1.msra.mxu0 %v123
    %141 = vmatprep.subr.mxu0 0.0
    %142 = vmatpush1.msra.mxu0 %v124
    %143 = vmatprep.subr.mxu0 0.0
    %144 = vmatpush1.msra.mxu0 %v125
    %145 = vmatprep.subr.mxu0 0.0
    %146 = vmatpush1.msra.mxu0 %v126
    %147 = vmatprep.subr.mxu0 0.0
    %148 = vmatpush1.msra.mxu0 0.0
    %149 = vmatprep.subr.mxu0 0.0
    %150 = vmatpush1.msra.mxu0 0.0
    %151 = vmatprep.subr.mxu0 0.0
    %152 = vmatpush1.msra.mxu0 0.0
    %153 = vmatprep.subr.mxu0 0.0
    %154 = vmatpush1.msra.mxu0 0.0
    %155 = vmatprep.subr.mxu0 0.0
    %156 = vmatpush1.msra.mxu0 0.0
    %157 = vmatprep.subr.mxu0 0.0
    %158 = vmatpush1.msra.mxu0 0.0
    %159 = vmatprep.subr.mxu0 0.0
    %160 = vmatpush1.msra.mxu0 0.0
    %161 = vmatprep.subr.mxu0 0.0
    %162 = vmatpush1.msra.mxu0 0.0
    %163 = vmatprep.subr.mxu0 0.0
    %164 = vmatpush1.msra.mxu0 0.0
    %165 = vmatprep.subr.mxu0 0.0
    %166 = vmatpush1.msra.mxu0 0.0
    %167 = vmatprep.subr.mxu0 0.0
    %168 = vmatpush1.msra.mxu0 0.0
    %169 = vmatprep.subr.mxu0 0.0
    %170 = vmatpush1.msra.mxu0 0.0
    %171 = vmatprep.subr.mxu0 0.0
    %172 = vmatpush1.msra.mxu0 0.0
    %173 = vmatprep.subr.mxu0 0.0
    %174 = vmatpush1.msra.mxu0 0.0
    %175 = vmatprep.subr.mxu0 0.0
    %176 = vmatpush1.msra.mxu0 0.0
    %177 = vmatprep.subr.mxu0 0.0
    %178 = vmatpush1.msra.mxu0 0.0
    %179 = vmatprep.subr.mxu0 0.0
    %180 = vmatpush1.msra.mxu0 0.0
    %181 = vmatprep.subr.mxu0 0.0
    %182 = vmatpush1.msra.mxu0 0.0
    %183 = vmatprep.subr.mxu0 0.0
    %184 = vmatpush1.msra.mxu0 0.0
    %185 = vmatprep.subr.mxu0 0.0
    %186 = vmatpush1.msra.mxu0 0.0
    %187 = vmatprep.subr.mxu0 0.0
    %188 = vmatpush1.msra.mxu0 0.0
    %189 = vmatprep.subr.mxu0 0.0
    %190 = vmatpush1.msra.mxu0 0.0
    %191 = vmatprep.subr.mxu0 0.0
    %192 = vmatpush1.msra.mxu0 0.0
    %193 = vmatprep.subr.mxu0 0.0
    %194 = vmatpush1.msra.mxu0 0.0
    %195 = vmatprep.mubr.f32.mxu0 0.0
    %196 = vmatmul.mubr.f32.gmra.mrb[0].mxu0 %v129
    %v197 = vpop.f32.mrb[0].mxu0
    %v198 = vadd.f32 0.0, %v197
    %v199 = vpop.f32.mrb[0].mxu0
    %200 = vdwg.mxu0
    %v201 = vadd.f32 %v117, %v198
    %202 = vst.msk [vmem:[#allocation2] sm:$0xff] %vm25, %v201
    // Predicated region
    $region18: #{tpu_custom_call.1} parent=1 // pred_check
      _
    $region19: #{tpu_custom_call.1} parent=1 // pred_check_branch
      %204 = sbr.rel (0) target = $region21
    $region20: #{tpu_custom_call.1} parent=1 // pred_region
      %s206 = ssub.s32 128, 128
      %207 = vsyncadd [#allocation3], %s206
      %s209 = sshll.u32 [#allocation2], 4
      %s210 = int_to_ptr.vmem [resolvable:$true] %s209
      %212 = dma.vmem_to_hbm [thread:$0]  %s210, 128, %s4, [#allocation3]
    $region21: #{tpu_custom_call.1} parent=1 // pred_fallthru
      _
    // Predicated region
    $region22: #{tpu_custom_call.1} parent=1 // pred_check
      _
    $region23: #{tpu_custom_call.1} parent=1 // pred_check_branch
      %214 = sbr.rel (0) target = $region25
    $region24: #{tpu_custom_call.1} parent=1 // pred_region
      %215 = dma.done [#allocation3], 128
    $region25: #{tpu_custom_call.1} parent=1 // pred_fallthru
      _
    %216 = vsyncpa [#allocation3], 1

</llo_original>
